<compile_context>
chip_gen: v6e
topology: v6e:2x2x1
jax: 0.10.0
libtpu: 0.0.40
codegen_flags: <defaults>
</compile_context>

<pallas_src>
import jax
import jax.numpy as jnp
from jax.experimental import pallas as pl
from jax.experimental.pallas import tpu as pltpu


# ---------------------------------------------------------------------------
# Kernels
# ---------------------------------------------------------------------------

def _upsample_row_kernel(x_ref, e_ref, o_ref):
    """Grouped-row path: one MXU matmul straight into the output block."""
    o_ref[...] = jnp.dot(
        x_ref[...], e_ref[...], preferred_element_type=jnp.float32
    ).astype(o_ref.dtype)


def _upsample_wtile_kernel(x_ref, e_ref, o_ref, acc_ref):
    """W-tiled path: compute once (p == 0), re-store the cached tile s times."""
    @pl.when(pl.program_id(2) == 0)
    def _():
        acc_ref[...] = jnp.dot(
            x_ref[...], e_ref[...], preferred_element_type=jnp.float32
        )
    o_ref[...] = acc_ref[...].astype(o_ref.dtype)


# ---------------------------------------------------------------------------
# Host-side tiling heuristics
# ---------------------------------------------------------------------------

def _choose_block_rows(m, row_bytes, target_bytes=4 << 20):
    """Rows per grid step (~4 MiB of output per step, divisor of m, mult of 8)."""
    if m % 8 != 0:
        return m  # full extent is always a legal block dim
    tm = max(8, min(m, target_bytes // max(1, row_bytes)))
    tm = (tm // 8) * 8
    for cand in range(tm, 7, -8):  # prefer a divisor of m (no ragged block)
        if m % cand == 0:
            return cand
    return m


def _choose_group(m, w, s, kin_cap=128):
    """Number of H-rows grouped per flattened row for the grouped-row path.

    Prefers the smallest g (dividing m, with g*w <= kin_cap so the one-hot
    matmul stays cheap) that makes the output row width g*w*s*s a multiple of
    128 (fully lane-dense stores); otherwise minimizes the masked-lane waste.
    """
    base = w * s * s
    g_cap = max(1, kin_cap // w)
    for g in range(1, g_cap + 1):
        if m % g == 0 and (g * base) % 128 == 0:
            return g
    best_g, best_waste = 1, None
    for g in range(1, g_cap + 1):
        if m % g:
            continue
        kout = g * base
        waste = ((-kout) % 128) / kout
        if best_waste is None or waste < best_waste:
            best_g, best_waste = g, waste
    return best_g


# ---------------------------------------------------------------------------
# Public op
# ---------------------------------------------------------------------------

def upsample_nearest(x, scale_factor):
    """Nearest-neighbor upsample of an NCHW tensor by an integer scale factor."""
    s = int(scale_factor)
    if s != scale_factor or s < 1:
        # TODO(synk): fractional / per-axis scale factors (PyTorch supports them).
        raise NotImplementedError("only positive integer scale factors are supported")
    if not jnp.issubdtype(x.dtype, jnp.floating):
        # TODO(synk): integer dtypes would need a non-MXU expansion path.
        raise NotImplementedError("only floating-point inputs are supported")

    N, C, H, W = x.shape
    if s == 1:
        return x

    M = N * C * H
    itemsize = jnp.dtype(x.dtype).itemsize

    # ---------------- Path B: W is a multiple of 128 (tile the W axis) -------
    if W % 128 == 0:
        tw = 128
        for cand in range(min(512, W), 127, -128):
            if W % cand == 0:
                tw = cand
                break
        wb = W // tw
        tw_out = tw * s

        wo = jnp.arange(tw_out)
        expand = ((wo[None, :] // s) == jnp.arange(tw)[:, None]).astype(x.dtype)

        tm = _choose_block_rows(M, tw_out * itemsize)
        mb = pl.cdiv(M, tm)

        x2 = x.reshape(M, W)
        out2_shape = jax.ShapeDtypeStruct((M, s * W * s), x.dtype)

        y2 = pl.pallas_call(
            _upsample_wtile_kernel,
            out_shape=out2_shape,
            grid_spec=pltpu.PrefetchScalarGridSpec(
                num_scalar_prefetch=0,
                grid=(mb, wb, s),
                in_specs=[
                    # Input block is independent of p -> not re-DMA'd across
                    # the H-repeat phases.
                    pl.BlockSpec((tm, tw), lambda i, j, p: (i, j)),
                    # Expansion matrix: same block every step -> stays in VMEM.
                    pl.BlockSpec((tw, tw_out), lambda i, j, p: (0, 0)),
                ],
                # The s H-repeat copies land at stride W*s within each
                # flattened output row -> output column block p*wb + j.
                out_specs=pl.BlockSpec(
                    (tm, tw_out), lambda i, j, p: (i, p * wb + j)
                ),
                scratch_shapes=[pltpu.VMEM((tm, tw_out), jnp.float32)],
            ),
            compiler_params=pltpu.CompilerParams(
                dimension_semantics=("parallel", "parallel", "arbitrary"),
            ),
        )(x2, expand)
        # (M, s*W*s) == (N, C, H, s, W*s) row-major == (N, C, H*s, W*s).
        return y2.reshape(N, C, H * s, W * s)

    # ---------------- Path A: small / irregular W (grouped rows) -------------
    # TODO(synk): very large W that is not a multiple of 128 keeps g=1 here; the
    # expansion matrix / MXU work would grow linearly with W in that case.
    g = _choose_group(M, W, s)
    R = M // g
    kin = g * W
    kout = g * W * s * s

    # Constant 0/1 expansion matrix (block-diagonal over the g grouped rows):
    # output column o of a grouped row sources input column
    #   (o // (W*s*s)) * W + ((o % (W*s)) // s)
    # i.e. the s H-copies and the s-fold W-repeat of each of the g rows.
    oo = jnp.arange(kout)
    src = (oo // (W * s * s)) * W + (oo % (W * s)) // s
    expand = (src[None, :] == jnp.arange(kin)[:, None]).astype(x.dtype)

    tm = _choose_block_rows(R, kout * itemsize)
    rb = pl.cdiv(R, tm)

    xg = x.reshape(R, kin)
    outg_shape = jax.ShapeDtypeStruct((R, kout), x.dtype)

    yg = pl.pallas_call(
        _upsample_row_kernel,
        out_shape=outg_shape,
        grid_spec=pltpu.PrefetchScalarGridSpec(
            num_scalar_prefetch=0,
            grid=(rb,),
            in_specs=[
                pl.BlockSpec((tm, kin), lambda i: (i, 0)),
                pl.BlockSpec((kin, kout), lambda i: (0, 0)),
            ],
            out_specs=pl.BlockSpec((tm, kout), lambda i: (i, 0)),
        ),
        compiler_params=pltpu.CompilerParams(
            dimension_semantics=("parallel",),
        ),
    )(xg, expand)
    # (M/g, g*s*s*W) is the same contiguous buffer as (N, C, H*s, W*s).
    return yg.reshape(N, C, H * s, W * s)


class Upsample:
    """Mirror of the PyTorch module (nearest mode only)."""

    def __init__(self, scale_factor, mode="nearest"):
        if mode != "nearest":
            # TODO(synk): bilinear / other interpolation modes not implemented.
            raise NotImplementedError("only mode='nearest' is supported")
        self.scale_factor = scale_factor
        self.mode = mode

    def __call__(self, x):
        return upsample_nearest(x, self.scale_factor)


def upsample_nearest_ref(x, scale_factor):
    """Pure-JAX reference matching F.interpolate(mode='nearest')."""
    s = int(scale_factor)
    x = jnp.repeat(x, s, axis=2)
    x = jnp.repeat(x, s, axis=3)
    return x


if __name__ == "__main__":
    key = jax.random.PRNGKey(0)
    k1, k2, k3 = jax.random.split(key, 3)

    # Module-consistent NCHW shape: grouped-row path (g=2 -> 256-lane-dense rows).
    x = jax.random.normal(k1, (2, 4, 16, 16), dtype=jnp.float32)
    up = Upsample(scale_factor=2, mode="nearest")
    out = jax.block_until_ready(up(x))
    ref = upsample_nearest_ref(x, 2)
    assert out.shape == (2, 4, 32, 32)
    assert jnp.allclose(out, ref), "Pallas upsample mismatch vs reference (grouped path)"

    # Wide-W input exercises the 128-lane W-tiled path (p grid axis + scratch reuse).
    x_wide = jax.random.normal(k2, (1, 2, 8, 128), dtype=jnp.float32)
    out_wide = jax.block_until_ready(upsample_nearest(x_wide, 2))
    ref_wide = upsample_nearest_ref(x_wide, 2)
    assert out_wide.shape == (1, 2, 16, 256)
    assert jnp.allclose(out_wide, ref_wide), "Pallas upsample mismatch vs reference (W-tiled path)"

    # Odd spatial sizes and s=3: grouping fallback + full-extent row block.
    x_odd = jax.random.normal(k3, (1, 2, 5, 7), dtype=jnp.float32)
    out_odd = jax.block_until_ready(upsample_nearest(x_odd, 3))
    ref_odd = upsample_nearest_ref(x_odd, 3)
    assert out_odd.shape == (1, 2, 15, 21)
    assert jnp.allclose(out_odd, ref_odd), "Pallas upsample mismatch vs reference (odd path)"

    print("KERNEL_OK")
</pallas_src>

<mosaic_0001>
module attributes {stable_mosaic.version = 11 : i64} {
  func.func @_upsample_row_kernel(%arg0: i32, %arg1: memref<64x32xf32, #tpu.memory_space<vmem>>, %arg2: memref<32x128xf32, #tpu.memory_space<vmem>>, %arg3: memref<64x128xf32, #tpu.memory_space<vmem>>) attributes {dimension_semantics = [#tpu.dimension_semantics<parallel>], iteration_bounds = array<i64: 1>, scalar_prefetch = 0 : i64, scratch_operands = 0 : i64, tpu.core_type = #tpu.core_type<tc>, window_params = [{transform_indices = @transform_0, window_bounds = array<i64: 64, 32>}, {pipeline_mode = #tpu.pipeline_mode<synchronous>, transform_indices = @transform_1, window_bounds = array<i64: 32, 128>}, {transform_indices = @transform_2, window_bounds = array<i64: 64, 128>}]} {
    %c0 = arith.constant 0 : index
    %c0_0 = arith.constant 0 : index
    %0 = vector.load %arg1[%c0, %c0_0] : memref<64x32xf32, #tpu.memory_space<vmem>>, vector<64x32xf32>
    %c0_1 = arith.constant 0 : index
    %c0_2 = arith.constant 0 : index
    %1 = vector.load %arg2[%c0_1, %c0_2] : memref<32x128xf32, #tpu.memory_space<vmem>>, vector<32x128xf32>
    %cst = arith.constant dense<0.000000e+00> : vector<64x128xf32>
    %2 = tpu.matmul %0, %1, %cst {dimension_numbers = #tpu.dot_dimension_numbers<[1], [0], [0], [1], [0, 0, 1, 1], [], []>} : vector<64x32xf32>, vector<32x128xf32>, vector<64x128xf32> -> vector<64x128xf32>
    %c0_3 = arith.constant 0 : index
    %c0_4 = arith.constant 0 : index
    %3 = vector.load %arg3[%c0_3, %c0_4] : memref<64x128xf32, #tpu.memory_space<vmem>>, vector<64x128xf32>
    tpu.vector_store %arg3[%c0_3, %c0_4], %2 {strides = array<i32>} : memref<64x128xf32, #tpu.memory_space<vmem>>, vector<64x128xf32>,
    return
  }
  func.func @transform_0(%arg0: i32) -> (i32, i32) {
    %c0_i32 = arith.constant 0 : i32
    %c0_i32_0 = arith.constant 0 : i32
    return %arg0, %c0_i32 : i32, i32
  }
  func.func @transform_1(%arg0: i32) -> (i32, i32) {
    %c0_i32 = arith.constant 0 : i32
    %c0_i32_0 = arith.constant 0 : i32
    %c0_i32_1 = arith.constant 0 : i32
    return %c0_i32, %c0_i32_0 : i32, i32
  }
  func.func @transform_2(%arg0: i32) -> (i32, i32) {
    %c0_i32 = arith.constant 0 : i32
    %c0_i32_0 = arith.constant 0 : i32
    return %arg0, %c0_i32 : i32, i32
  }
}

</mosaic_0001>

<llo_original>
// kernel: tpu_custom_call.1
$region0: #{tpu_custom_call.1}
  #allocation0 [shape = 'u32[]', space=smem, size = 0x4, offset = 0x4, fixed_abs, tag = 'smem constant byte address 0x4 - core index']
  #allocation1 [shape = 'u32[144,128]{1,0:T(1,128)}', space=vmem, size = 0x12000, scoped, tag = 'internal scratch']
  %s0 = inlined_call_operand.vmem [shape: f32[64,32], index: 0, kind: input, shape index: {}]
  %s1 = inlined_call_operand.vmem [shape: f32[32,128], index: 1, kind: input, shape index: {}]
  %s2 = inlined_call_operand.hbm [shape: f32[64,128], index: 2, kind: output, shape index: {}]
  %s3 = sld [smem:[#allocation0]]
  $region18: #{tpu_custom_call.1} parent=0
    _
  %s5 = ssub.s32 1, %s3
  %s6 = scalar_select 0, %s5, %s3
  $region1: #{tpu_custom_call.1} parent=0
    #allocation2 [shape = 'u8[32768]{0}', space=vmem, size = 0x8000, scoped, tag = 'output window, operand 0, single buffered']
    #allocation3 [shape = 's32[1]{0}', space=sflag, size = 0x4, scoped, tag = 'scoped memory for tpu_custom_call.1']
    %7 = vsyncpa [#allocation3], 0
    // Predicated region
    $region2: #{tpu_custom_call.1} parent=1 // pred_check
      _
    $region3: #{tpu_custom_call.1} parent=1 // pred_check_branch
      %9 = sbr.rel (0) target = $region5
    $region4: #{tpu_custom_call.1} parent=1 // pred_region
      _
    $region5: #{tpu_custom_call.1} parent=1 // pred_fallthru
      _
    // Predicated region
    $region6: #{tpu_custom_call.1} parent=1 // pred_check
      _
    $region7: #{tpu_custom_call.1} parent=1 // pred_check_branch
      %11 = sbr.rel (0) target = $region9
    $region8: #{tpu_custom_call.1} parent=1 // pred_region
      _
    $region9: #{tpu_custom_call.1} parent=1 // pred_fallthru
      _
    %v12 = vld [vmem:[%s0] sm:$0xff]
    %v13 = vld [vmem:[%s0 + $0x8] sm:$0xff]
    %v14 = vld [vmem:[%s0 + $0x10] sm:$0xff]
    %v15 = vld [vmem:[%s0 + $0x18] sm:$0xff]
    %v16 = vld [vmem:[%s0 + $0x20] sm:$0xff]
    %v17 = vld [vmem:[%s0 + $0x28] sm:$0xff]
    %v18 = vld [vmem:[%s0 + $0x30] sm:$0xff]
    %v19 = vld [vmem:[%s0 + $0x38] sm:$0xff]
    %v20 = vld [vmem:[%s1] sm:$0xff]
    %v21 = vld [vmem:[%s1 + $0x8] sm:$0xff]
    %v22 = vld [vmem:[%s1 + $0x10] sm:$0xff]
    %v23 = vld [vmem:[%s1 + $0x18] sm:$0xff]
    %vm24 = vcmask 261120
    %v26 = vsel %vm24, %v12, 0
    %v29 = vsel %vm24, %v13, 0
    %v32 = vsel %vm24, %v14, 0
    %v35 = vsel %vm24, %v15, 0
    %v38 = vsel %vm24, %v16, 0
    %v41 = vsel %vm24, %v17, 0
    %v44 = vsel %vm24, %v18, 0
    %v47 = vsel %vm24, %v19, 0
    %49 = vmatprep.subr.mxu0 0.0
    %50 = vmatpush1.msra.mxu0 0.0
    %51 = vmatprep.subr.mxu0 0.0
    %52 = vmatpush1.msra.mxu0 0.0
    %53 = vmatprep.subr.mxu0 0.0
    %54 = vmatpush1.msra.mxu0 0.0
    %55 = vmatprep.subr.mxu0 0.0
    %56 = vmatpush1.msra.mxu0 0.0
    %57 = vmatprep.subr.mxu0 0.0
    %58 = vmatpush1.msra.mxu0 0.0
    %59 = vmatprep.subr.mxu0 0.0
    %60 = vmatpush1.msra.mxu0 0.0
    %61 = vmatprep.subr.mxu0 0.0
    %62 = vmatpush1.msra.mxu0 0.0
    %63 = vmatprep.subr.mxu0 0.0
    %64 = vmatpush1.msra.mxu0 0.0
    %65 = vmatprep.subr.mxu0 0.0
    %66 = vmatpush1.msra.mxu0 0.0
    %67 = vmatprep.subr.mxu0 0.0
    %68 = vmatpush1.msra.mxu0 0.0
    %69 = vmatprep.subr.mxu0 0.0
    %70 = vmatpush1.msra.mxu0 0.0
    %71 = vmatprep.subr.mxu0 0.0
    %72 = vmatpush1.msra.mxu0 0.0
    %73 = vmatprep.subr.mxu0 0.0
    %74 = vmatpush1.msra.mxu0 %v23
    %75 = vmatprep.subr.mxu0 0.0
    %76 = vmatpush1.msra.mxu0 %v22
    %77 = vmatprep.subr.mxu0 0.0
    %78 = vmatpush1.msra.mxu0 %v21
    %79 = vmatprep.subr.mxu0 0.0
    %80 = vmatpush1.msra.mxu0 %v20
    %81 = vmatprep.subr.mxu0 0.0
    %82 = vmatpush2.msra.mxu0 0.0
    %83 = vmatprep.subr.mxu0 0.0
    %84 = vmatpush2.msra.mxu0 0.0
    %85 = vmatprep.subr.mxu0 0.0
    %86 = vmatpush2.msra.mxu0 0.0
    %87 = vmatprep.subr.mxu0 0.0
    %88 = vmatpush2.msra.mxu0 0.0
    %89 = vmatprep.subr.mxu0 0.0
    %90 = vmatpush2.msra.mxu0 0.0
    %91 = vmatprep.subr.mxu0 0.0
    %92 = vmatpush2.msra.mxu0 0.0
    %93 = vmatprep.subr.mxu0 0.0
    %94 = vmatpush2.msra.mxu0 0.0
    %95 = vmatprep.subr.mxu0 0.0
    %96 = vmatpush2.msra.mxu0 0.0
    %97 = vmatprep.subr.mxu0 0.0
    %98 = vmatpush2.msra.mxu0 0.0
    %99 = vmatprep.subr.mxu0 0.0
    %100 = vmatpush2.msra.mxu0 0.0
    %101 = vmatprep.subr.mxu0 0.0
    %102 = vmatpush2.msra.mxu0 0.0
    %103 = vmatprep.subr.mxu0 0.0
    %104 = vmatpush2.msra.mxu0 0.0
    %105 = vmatprep.subr.mxu0 0.0
    %106 = vmatpush2.msra.mxu0 0.0
    %107 = vmatprep.subr.mxu0 0.0
    %108 = vmatpush2.msra.mxu0 0.0
    %109 = vmatprep.subr.mxu0 0.0
    %110 = vmatpush2.msra.mxu0 0.0
    %111 = vmatprep.subr.mxu0 0.0
    %112 = vmatpush2.msra.mxu0 0.0
    %113 = vmatprep.mubr.f32.mxu0 0.0
    %114 = vmatmul.mubr.f32.gmra.mxu0 %v26
    %v115 = vpop.f32.mrf.mxu0
    %v116 = vadd.f32 0.0, %v115
    %v117 = vpop.f32.mrf.mxu0
    %118 = vmatprep.mubr.f32.mxu0 0.0
    %119 = vmatmul.mubr.f32.gmra.mxu0 %v29
    %v120 = vpop.f32.mrf.mxu0
    %v121 = vadd.f32 0.0, %v120
    %v122 = vpop.f32.mrf.mxu0
    %123 = vmatprep.mubr.f32.mxu0 0.0
    %124 = vmatmul.mubr.f32.gmra.mxu0 %v32
    %v125 = vpop.f32.mrf.mxu0
    %v126 = vadd.f32 0.0, %v125
    %v127 = vpop.f32.mrf.mxu0
    %128 = vmatprep.mubr.f32.mxu0 0.0
    %129 = vmatmul.mubr.f32.gmra.mxu0 %v35
    %v130 = vpop.f32.mrf.mxu0
    %v131 = vadd.f32 0.0, %v130
    %v132 = vpop.f32.mrf.mxu0
    %133 = vmatprep.mubr.f32.mxu0 0.0
    %134 = vmatmul.mubr.f32.gmra.mxu0 %v38
    %v135 = vpop.f32.mrf.mxu0
    %v136 = vadd.f32 0.0, %v135
    %v137 = vpop.f32.mrf.mxu0
    %138 = vmatprep.mubr.f32.mxu0 0.0
    %139 = vmatmul.mubr.f32.gmra.mxu0 %v41
    %v140 = vpop.f32.mrf.mxu0
    %v141 = vadd.f32 0.0, %v140
    %v142 = vpop.f32.mrf.mxu0
    %143 = vmatprep.mubr.f32.mxu0 0.0
    %144 = vmatmul.mubr.f32.gmra.mxu0 %v44
    %v145 = vpop.f32.mrf.mxu0
    %v146 = vadd.f32 0.0, %v145
    %v147 = vpop.f32.mrf.mxu0
    %148 = vmatprep.mubr.f32.mxu0 0.0
    %149 = vmatmul.mubr.f32.gmra.mxu0 %v47
    %v150 = vpop.f32.mrf.mxu0
    %v151 = vadd.f32 0.0, %v150
    %v152 = vpop.f32.mrf.mxu0
    %153 = vdwg.mxu0
    %154 = vst [vmem:[#allocation2] sm:$0xff] %v116
    %155 = vst [vmem:[#allocation2 + $0x8] sm:$0xff] %v121
    %156 = vst [vmem:[#allocation2 + $0x10] sm:$0xff] %v126
    %157 = vst [vmem:[#allocation2 + $0x18] sm:$0xff] %v131
    %158 = vst [vmem:[#allocation2 + $0x20] sm:$0xff] %v136
    %159 = vst [vmem:[#allocation2 + $0x28] sm:$0xff] %v141
    %160 = vst [vmem:[#allocation2 + $0x30] sm:$0xff] %v146
    %161 = vst [vmem:[#allocation2 + $0x38] sm:$0xff] %v151
    // Predicated region
    $region10: #{tpu_custom_call.1} parent=1 // pred_check
      _
    $region11: #{tpu_custom_call.1} parent=1 // pred_check_branch
      %163 = sbr.rel (0) target = $region13
    $region12: #{tpu_custom_call.1} parent=1 // pred_region
      %s165 = ssub.s32 1024, 1024
      %166 = vsyncadd [#allocation3], %s165
      %s167 = sshll.u32 [#allocation2], 4
      %s168 = int_to_ptr.vmem [resolvable:$true] %s167
      %173 = dma.vmem_to_hbm [thread:$0]  %s168, 1024, %s2, [#allocation3], 128, 128, 8
    $region13: #{tpu_custom_call.1} parent=1 // pred_fallthru
      _
    // Predicated region
    $region14: #{tpu_custom_call.1} parent=1 // pred_check
      _
    $region15: #{tpu_custom_call.1} parent=1 // pred_check_branch
      %175 = sbr.rel (0) target = $region17
    $region16: #{tpu_custom_call.1} parent=1 // pred_region
      %176 = dma.done [#allocation3], 1024
    $region17: #{tpu_custom_call.1} parent=1 // pred_fallthru
      _
    %177 = vsyncpa [#allocation3], 1

</llo_original>
